<compile_context>
chip_gen: v7x
topology: tpu7x:2x2x1
jax: 0.10.0
libtpu: 0.0.40
codegen_flags: <defaults>
</compile_context>

<pallas_src>
import functools

import jax
import jax.numpy as jnp
from jax.experimental import pallas as pl
from jax.experimental.pallas import tpu as pltpu


def _kl_div_kernel(x_ref, t_ref, out_ref, acc_ref, *,
                   batch, blk, tiles_per_core, need_mask):
    """One (core, row-tile) step: fold tar * (log(tar) - log_softmax(x)) into acc."""
    i = pl.program_id(1)

    @pl.when(i == 0)
    def _():
        acc_ref[...] = jnp.zeros_like(acc_ref)

    x = x_ref[...].astype(jnp.float32)
    t = t_ref[...].astype(jnp.float32)

    # Target normalization: one exact reciprocal per row, then a multiply
    # (torch: tar_sum.masked_fill_(tar_sum == 0, 1e-6); tar = t / tar_sum).
    tsum = jnp.sum(t, axis=1, keepdims=True)
    inv = 1.0 / jnp.where(tsum == 0.0, 1e-6, tsum)
    tar = t * inv

    # Numerically stable log-softmax along the class axis.
    m = jnp.max(x, axis=1, keepdims=True)
    lse = jnp.log(jnp.sum(jnp.exp(x - m), axis=1, keepdims=True)) + m
    logp = x - lse

    # KL term with 0 * log(0) := 0 (torch masked_fill on tar == 0 before log).
    log_tar = jnp.log(jnp.where(tar == 0.0, 1.0, tar))
    contrib = tar * (log_tar - logp)                       # (blk, C) f32

    if need_mask:
        # Rows past the true batch size read unspecified data; mask the
        # *product* (not just tar) so garbage / NaN rows contribute exactly 0.
        row0 = (pl.program_id(0) * tiles_per_core + i) * blk
        rows = jax.lax.broadcasted_iota(jnp.int32, (blk, 1), 0) + row0
        contrib = jnp.where(rows < batch, contrib, 0.0)

    # Fold 8-row groups into the small (8, C) accumulator: static slices on
    # sublane-tile boundaries + elementwise adds (pure VPU, no relayout).
    folded = contrib[0:8, :]
    for g in range(1, blk // 8):
        folded = folded + contrib[8 * g:8 * (g + 1), :]
    acc_ref[...] += folded

    @pl.when(i == pl.num_programs(1) - 1)
    def _():
        out_ref[...] = acc_ref[...]


def _round_up(x, m):
    return ((x + m - 1) // m) * m


def _sublane_granule(dtype):
    # Native sublane tile: 8 rows for 4-byte, 16 for 2-byte, 32 for 1-byte.
    return max(8, 32 // jnp.dtype(dtype).itemsize)


def softmax_kldiv_loss(scores, targets, *, num_cores=1,
                       tile_vmem_budget=16 * 1024 * 1024,
                       max_rows_per_tile=1024,
                       vmem_limit_bytes=32 * 1024 * 1024):
    """scores, targets: (B, C). Returns the scalar SoftmaxKlDivLoss (f32)."""
    B, C = scores.shape
    assert targets.shape == (B, C)

    granule = max(_sublane_granule(scores.dtype), _sublane_granule(targets.dtype))

    # VMEM residency per (row, class) element: 2 inputs x 2 pipeline buffers.
    # (The accumulator is only 8*C*4 bytes and is ignored here.)
    bytes_per_elem = 2 * (scores.dtype.itemsize + targets.dtype.itemsize)
    blk = (tile_vmem_budget // (C * bytes_per_elem)) // granule * granule
    if blk < granule:
        # TODO(synk): tile the class axis (extra innermost "arbitrary" grid axis
        # with running max/lse) when C is so large that even one granule-row
        # tile exceeds the VMEM budget; for now fail loudly instead of OOMing.
        raise ValueError(
            f"class axis C={C} too large for the untiled class dimension "
            f"(one {granule}-row tile exceeds tile_vmem_budget="
            f"{tile_vmem_budget} bytes)")
    blk = min(blk, max_rows_per_tile,
              _round_up(pl.cdiv(B, num_cores), granule))

    tiles_per_core = pl.cdiv(pl.cdiv(B, num_cores), blk)
    covered = num_cores * tiles_per_core * blk
    need_mask = covered > B
    last_block = pl.cdiv(B, blk) - 1            # last block index with rows < B

    def in_index_map(c, i):
        b = c * tiles_per_core + i
        if num_cores > 1:
            # Cores past the data (tiny B) re-read the last valid block; the
            # in-kernel row mask zeroes their contribution.
            b = jnp.minimum(b, last_block)
        return (b, 0)

    kernel = functools.partial(
        _kl_div_kernel, batch=B, blk=blk,
        tiles_per_core=tiles_per_core, need_mask=need_mask)

    if num_cores > 1:
        # TODO(synk): verify CORE_PARALLEL truly shards across v7x's two
        # TensorCores on hardware; plain "parallel" may run sequentially.
        dim_sem = (pltpu.CORE_PARALLEL, pltpu.ARBITRARY)
    else:
        dim_sem = ("arbitrary", "arbitrary")

    partials = pl.pallas_call(
        kernel,
        out_shape=jax.ShapeDtypeStruct((num_cores * 8, C), jnp.float32),
        grid_spec=pltpu.PrefetchScalarGridSpec(
            num_scalar_prefetch=0,
            grid=(num_cores, tiles_per_core),
            in_specs=[
                pl.BlockSpec((blk, C), in_index_map),
                pl.BlockSpec((blk, C), in_index_map),
            ],
            out_specs=pl.BlockSpec((8, C), lambda c, i: (c, 0)),
            scratch_shapes=[pltpu.VMEM((8, C), jnp.float32)],
        ),
        compiler_params=pltpu.CompilerParams(
            dimension_semantics=dim_sem,
            vmem_limit_bytes=vmem_limit_bytes,
        ),
    )(scores, targets)

    # torch: loss = sum(per_row_loss) / loss.size(0)  (batch size B)
    return jnp.sum(partials) / B


def _reference(scores, targets):
    """Pure-JAX replica of the PyTorch SoftmaxKlDivLoss forward."""
    scores = scores.astype(jnp.float32)
    targets = targets.astype(jnp.float32)
    tsum = jnp.sum(targets, axis=1, keepdims=True)
    tsum = jnp.where(tsum == 0.0, 1e-6, tsum)
    tar = targets / tsum
    logp = jax.nn.log_softmax(scores, axis=1)
    log_tar = jnp.log(jnp.where(tar == 0.0, 1.0, tar))
    per_row = jnp.sum(tar * (log_tar - logp), axis=1, keepdims=True)
    return jnp.sum(per_row) / per_row.shape[0]


if __name__ == "__main__":
    key = jax.random.PRNGKey(0)
    k1, k2, k3, k4, k5, k6 = jax.random.split(key, 6)

    # Case 1: small C (< 128), sparse targets, one all-zero target row.
    B1, C1 = 8, 32
    scores1 = jax.random.normal(k1, (B1, C1), dtype=jnp.float32)
    targets1 = jax.random.uniform(k2, (B1, C1), dtype=jnp.float32)
    targets1 = jnp.where(targets1 < 0.5, 0.0, targets1)   # exercises 0*log(0)
    targets1 = targets1.at[3].set(0.0)                    # exercises tar_sum == 0
    loss1 = softmax_kldiv_loss(scores1, targets1)
    jax.block_until_ready(loss1)
    ref1 = _reference(scores1, targets1)
    assert jnp.allclose(loss1, ref1, rtol=1e-4, atol=1e-5), (loss1, ref1)

    # Case 2: C >= 128 and blk = 16 (multi-group row fold).
    B2, C2 = 16, 256
    scores2 = jax.random.normal(k3, (B2, C2), dtype=jnp.float32)
    targets2 = jax.random.uniform(k4, (B2, C2), dtype=jnp.float32)
    targets2 = jnp.where(targets2 < 0.7, 0.0, targets2)
    loss2 = softmax_kldiv_loss(scores2, targets2)
    jax.block_until_ready(loss2)
    ref2 = _reference(scores2, targets2)
    assert jnp.allclose(loss2, ref2, rtol=1e-4, atol=1e-5), (loss2, ref2)

    # Case 3: ragged batch (B not a multiple of 8) -> in-kernel row-mask path.
    B3, C3 = 13, 200
    scores3 = jax.random.normal(k5, (B3, C3), dtype=jnp.float32)
    targets3 = jax.random.uniform(k6, (B3, C3), dtype=jnp.float32)
    loss3 = softmax_kldiv_loss(scores3, targets3)
    jax.block_until_ready(loss3)
    ref3 = _reference(scores3, targets3)
    assert jnp.allclose(loss3, ref3, rtol=1e-4, atol=1e-5), (loss3, ref3)

    print("KERNEL_OK")
</pallas_src>

<mosaic_0001>
module attributes {stable_mosaic.version = 11 : i64} {
  func.func @_kl_div_kernel(%arg0: i32, %arg1: i32, %arg2: memref<8x32xf32, #tpu.memory_space<vmem>>, %arg3: memref<8x32xf32, #tpu.memory_space<vmem>>, %arg4: memref<8x32xf32, #tpu.memory_space<vmem>>, %arg5: memref<8x32xf32, #tpu.memory_space<vmem>>) attributes {dimension_semantics = [#tpu.dimension_semantics<arbitrary>, #tpu.dimension_semantics<arbitrary>], iteration_bounds = array<i64: 1, 1>, scalar_prefetch = 0 : i64, scratch_operands = 1 : i64, tpu.core_type = #tpu.core_type<tc>, window_params = [{transform_indices = @transform_0, window_bounds = array<i64: 8, 32>}, {transform_indices = @transform_1, window_bounds = array<i64: 8, 32>}, {transform_indices = @transform_2, window_bounds = array<i64: 8, 32>}]} {
    %c0_i32 = arith.constant 0 : i32
    %0 = arith.cmpi eq, %arg1, %c0_i32 : i32
    %1 = arith.extui %0 : i1 to i32
    %c0_i32_0 = arith.constant 0 : i32
    %2 = arith.cmpi ne, %1, %c0_i32_0 : i32
    scf.if %2 {
      %cst_17 = arith.constant 0.000000e+00 : f32
      %39 = vector.broadcast %cst_17 : f32 to vector<8x32xf32>
      %c0_18 = arith.constant 0 : index
      %c0_19 = arith.constant 0 : index
      %40 = vector.load %arg5[%c0_18, %c0_19] : memref<8x32xf32, #tpu.memory_space<vmem>>, vector<8x32xf32>
      tpu.vector_store %arg5[%c0_18, %c0_19], %39 {strides = array<i32>} : memref<8x32xf32, #tpu.memory_space<vmem>>, vector<8x32xf32>,
    } else {
    }
    %c0 = arith.constant 0 : index
    %c0_1 = arith.constant 0 : index
    %3 = vector.load %arg2[%c0, %c0_1] : memref<8x32xf32, #tpu.memory_space<vmem>>, vector<8x32xf32>
    %c0_2 = arith.constant 0 : index
    %c0_3 = arith.constant 0 : index
    %4 = vector.load %arg3[%c0_2, %c0_3] : memref<8x32xf32, #tpu.memory_space<vmem>>, vector<8x32xf32>
    %cst = arith.constant dense<0.000000e+00> : vector<8xf32>
    %5 = vector.multi_reduction <add>, %4, %cst [1] : vector<8x32xf32> to vector<8xf32>
    %6 = vector.shape_cast %5 : vector<8xf32> to vector<8x1xf32>
    %cst_4 = arith.constant 0.000000e+00 : f32
    %7 = vector.broadcast %cst_4 : f32 to vector<8x1xf32>
    %8 = arith.cmpf oeq, %6, %7 : vector<8x1xf32>
    %cst_5 = arith.constant 9.99999997E-7 : f32
    %9 = vector.broadcast %cst_5 : f32 to vector<8x1xf32>
    %10 = arith.select %8, %9, %6 : vector<8x1xi1>, vector<8x1xf32>
    %cst_6 = arith.constant 1.000000e+00 : f32
    %11 = vector.broadcast %cst_6 : f32 to vector<8x1xf32>
    %12 = arith.divf %11, %10 : vector<8x1xf32>
    %13 = vector.broadcast %12 : vector<8x1xf32> to vector<8x32xf32>
    %14 = arith.mulf %4, %13 : vector<8x32xf32>
    %cst_7 = arith.constant dense<0xFF800000> : vector<8xf32>
    %15 = vector.multi_reduction <maximumf>, %3, %cst_7 [1] : vector<8x32xf32> to vector<8xf32>
    %16 = vector.shape_cast %15 : vector<8xf32> to vector<8x1xf32>
    %17 = vector.broadcast %16 : vector<8x1xf32> to vector<8x32xf32>
    %18 = arith.subf %3, %17 : vector<8x32xf32>
    %19 = math.exp %18 : vector<8x32xf32>
    %cst_8 = arith.constant dense<0.000000e+00> : vector<8xf32>
    %20 = vector.multi_reduction <add>, %19, %cst_8 [1] : vector<8x32xf32> to vector<8xf32>
    %21 = vector.shape_cast %20 : vector<8xf32> to vector<8x1xf32>
    %22 = math.log %21 : vector<8x1xf32>
    %23 = arith.addf %22, %16 : vector<8x1xf32>
    %24 = vector.broadcast %23 : vector<8x1xf32> to vector<8x32xf32>
    %25 = arith.subf %3, %24 : vector<8x32xf32>
    %cst_9 = arith.constant 0.000000e+00 : f32
    %26 = vector.broadcast %cst_9 : f32 to vector<8x32xf32>
    %27 = arith.cmpf oeq, %14, %26 : vector<8x32xf32>
    %cst_10 = arith.constant 1.000000e+00 : f32
    %28 = vector.broadcast %cst_10 : f32 to vector<8x32xf32>
    %29 = arith.select %27, %28, %14 : vector<8x32xi1>, vector<8x32xf32>
    %30 = math.log %29 : vector<8x32xf32>
    %31 = arith.subf %30, %25 : vector<8x32xf32>
    %32 = arith.mulf %14, %31 : vector<8x32xf32>
    %c0_11 = arith.constant 0 : index
    %c0_12 = arith.constant 0 : index
    %33 = vector.load %arg5[%c0_11, %c0_12] : memref<8x32xf32, #tpu.memory_space<vmem>>, vector<8x32xf32>
    %34 = arith.addf %33, %32 : vector<8x32xf32>
    %c0_13 = arith.constant 0 : index
    %c0_14 = arith.constant 0 : index
    %35 = vector.load %arg5[%c0_13, %c0_14] : memref<8x32xf32, #tpu.memory_space<vmem>>, vector<8x32xf32>
    tpu.vector_store %arg5[%c0_13, %c0_14], %34 {strides = array<i32>} : memref<8x32xf32, #tpu.memory_space<vmem>>, vector<8x32xf32>,
    %c0_i32_15 = arith.constant 0 : i32
    %36 = arith.cmpi eq, %arg1, %c0_i32_15 : i32
    %37 = arith.extui %36 : i1 to i32
    %c0_i32_16 = arith.constant 0 : i32
    %38 = arith.cmpi ne, %37, %c0_i32_16 : i32
    scf.if %38 {
      %c0_17 = arith.constant 0 : index
      %c0_18 = arith.constant 0 : index
      %39 = vector.load %arg5[%c0_17, %c0_18] : memref<8x32xf32, #tpu.memory_space<vmem>>, vector<8x32xf32>
      %c0_19 = arith.constant 0 : index
      %c0_20 = arith.constant 0 : index
      %40 = vector.load %arg4[%c0_19, %c0_20] : memref<8x32xf32, #tpu.memory_space<vmem>>, vector<8x32xf32>
      tpu.vector_store %arg4[%c0_19, %c0_20], %39 {strides = array<i32>} : memref<8x32xf32, #tpu.memory_space<vmem>>, vector<8x32xf32>,
    } else {
    }
    return
  }
  func.func @transform_0(%arg0: i32, %arg1: i32) -> (i32, i32) {
    %c1_i32 = arith.constant 1 : i32
    %0 = arith.muli %arg0, %c1_i32 : i32
    %1 = arith.addi %0, %arg1 : i32
    %c0_i32 = arith.constant 0 : i32
    %c0_i32_0 = arith.constant 0 : i32
    return %1, %c0_i32 : i32, i32
  }
  func.func @transform_1(%arg0: i32, %arg1: i32) -> (i32, i32) {
    %c1_i32 = arith.constant 1 : i32
    %0 = arith.muli %arg0, %c1_i32 : i32
    %1 = arith.addi %0, %arg1 : i32
    %c0_i32 = arith.constant 0 : i32
    %c0_i32_0 = arith.constant 0 : i32
    return %1, %c0_i32 : i32, i32
  }
  func.func @transform_2(%arg0: i32, %arg1: i32) -> (i32, i32) {
    %c0_i32 = arith.constant 0 : i32
    %c0_i32_0 = arith.constant 0 : i32
    return %arg0, %c0_i32 : i32, i32
  }
}

</mosaic_0001>

<llo_original>
// kernel: tpu_custom_call.1
$region0: #{tpu_custom_call.1}
  #allocation0 [shape = 'u32[]', space=smem, size = 0x4, offset = 0x4, fixed_abs, tag = 'smem constant byte address 0x4 - core index']
  #allocation1 [shape = 'u32[144,128]{1,0:T(1,128)}', space=vmem, size = 0x12000, scoped, tag = 'internal scratch']
  #allocation2 [shape = 'f32[8,32]{1,0:T(8,128)}', space=vmem, size = 0x1000, scoped, tag = 'scratch operand']
  %s0 = inlined_call_operand.hbm [shape: f32[8,32], index: 0, kind: input, shape index: {}]
  %s1 = inlined_call_operand.hbm [shape: f32[8,32], index: 1, kind: input, shape index: {}]
  %s2 = inlined_call_operand.hbm [shape: f32[8,32], index: 2, kind: output, shape index: {}]
  %s3 = sld [smem:[#allocation0]]
  $region34: #{tpu_custom_call.1} parent=0
    _
  %s5 = ssub.s32 1, %s3
  %s6 = scalar_select 0, %s5, %s3
  $region1: #{tpu_custom_call.1} parent=0
    #allocation3 [shape = 'u8[4096]{0}', space=vmem, size = 0x1000, scoped, tag = 'input window, operand 0, single buffered']
    #allocation4 [shape = 's32[1]{0}', space=sflag, size = 0x4, scoped, tag = 'scoped memory for tpu_custom_call.1']
    #allocation5 [shape = 's32[1]{0}', space=sflag, size = 0x4, scoped, tag = 'scoped memory for tpu_custom_call.1']
    #allocation6 [shape = 'u8[4096]{0}', space=vmem, size = 0x1000, scoped, tag = 'input window, operand 1, single buffered']
    #allocation7 [shape = 's32[1]{0}', space=sflag, size = 0x4, scoped, tag = 'scoped memory for tpu_custom_call.1']
    #allocation8 [shape = 'u8[4096]{0}', space=vmem, size = 0x1000, scoped, tag = 'output window, operand 0, single buffered']
    %7 = vsyncpa [#allocation4], 0
    %8 = vsyncpa [#allocation7], 0
    %9 = vsyncpa [#allocation5], 0
    // Predicated region
    $region2: #{tpu_custom_call.1} parent=1 // pred_check
      _
    $region3: #{tpu_custom_call.1} parent=1 // pred_check_branch
      %11 = sbr.rel (0) target = $region5
    $region4: #{tpu_custom_call.1} parent=1 // pred_region
      %s12 = sadd.s32 0, 0
      %s14 = ssub.s32 128, 128
      %15 = vsyncadd [#allocation4], %s14
      %s16 = smul.addr %s12, 128
      %s17 = scalar_lea.hbm %s0, %s16
      %s19 = sshll.u32 [#allocation3], 4
      %s20 = int_to_ptr.vmem [resolvable:$true] %s19
      %22 = dma.hbm_to_vmem [thread:$0]  %s17, 128, %s20, [#allocation4]
    $region5: #{tpu_custom_call.1} parent=1 // pred_fallthru
      _
    // Predicated region
    $region6: #{tpu_custom_call.1} parent=1 // pred_check
      _
    $region7: #{tpu_custom_call.1} parent=1 // pred_check_branch
      %24 = sbr.rel (0) target = $region9
    $region8: #{tpu_custom_call.1} parent=1 // pred_region
      %s25 = sadd.s32 0, 0
      %s27 = ssub.s32 128, 128
      %28 = vsyncadd [#allocation7], %s27
      %s29 = smul.addr %s25, 128
      %s30 = scalar_lea.hbm %s1, %s29
      %s32 = sshll.u32 [#allocation6], 4
      %s33 = int_to_ptr.vmem [resolvable:$true] %s32
      %35 = dma.hbm_to_vmem [thread:$0]  %s30, 128, %s33, [#allocation7]
    $region9: #{tpu_custom_call.1} parent=1 // pred_fallthru
      _
    // Predicated region
    $region10: #{tpu_custom_call.1} parent=1 // pred_check
      _
    $region11: #{tpu_custom_call.1} parent=1 // pred_check_branch
      %37 = sbr.rel (0) target = $region13
    $region12: #{tpu_custom_call.1} parent=1 // pred_region
      %38 = dma.done [#allocation4], 128
    $region13: #{tpu_custom_call.1} parent=1 // pred_fallthru
      _
    // Predicated region
    $region14: #{tpu_custom_call.1} parent=1 // pred_check
      _
    $region15: #{tpu_custom_call.1} parent=1 // pred_check_branch
      %40 = sbr.rel (0) target = $region17
    $region16: #{tpu_custom_call.1} parent=1 // pred_region
      %41 = dma.done [#allocation7], 128
    $region17: #{tpu_custom_call.1} parent=1 // pred_fallthru
      _
    %s42 = sadd.s32 0, 0
    %s43 = sadd.s32 0, 0
    %p44 = scmp.eq.s32.totalorder 0, 0
    // Predicated region
    $region18: #{tpu_custom_call.1} parent=1 // pred_check
      %p45 = pneg %p44
    $region19: #{tpu_custom_call.1} parent=1 // pred_check_branch
      %47 = sbr.rel (%p45) target = $region21
    $region20: #{tpu_custom_call.1} parent=1 // pred_region
      %vm48 = vcmask 261120
      %49 = vst.msk [vmem:[#allocation2] sm:$0xff] %vm48, 0.0
    $region21: #{tpu_custom_call.1} parent=1 // pred_fallthru
      _
    %v50 = vld [vmem:[#allocation3] sm:$0xff]
    %v51 = vld [vmem:[#allocation6] sm:$0xff]
    %vm52 = vcmask 261120
    %v53 = vsel %vm52, %v51, 0.0
    %54 = vadd.xlane.f32.xlu0 %v53
    %v55 = vpop.xlane.xlu0 %54
    %vm56 = vcmp.eq.f32.partialorder %v55, 0.0
    %v57 = vsel %vm56, 1e-06, %v55
    %v58 = vrcp.pop %v57
    %v59 = vmul.f32 1.0, %v58
    %v60 = vmul.f32 %v51, %v59
    %v61 = vsel %vm52, %v50, -inf
    %62 = vmax.xlane.f32.xlu0 %v61
    %v63 = vpop.xlane.xlu0 %62
    %v64 = vsub.f32 %v50, %v63
    %v65 = vmul.f32 %v64, 1.442695
    %v66 = vpow.pop %v65
    %v67 = vsel %vm52, %v66, 0.0
    %68 = vadd.xlane.f32.xlu0 %v67
    %v69 = vpop.xlane.xlu0 %68
    %v70 = vlog2.pop %v69
    %v71 = vmul.f32 %v70, 0.6931472
    %v72 = vadd.f32 %v71, %v63
    %v73 = vsub.f32 %v50, %v72
    %vm74 = vcmp.eq.f32.partialorder %v60, 0.0
    %v75 = vsel %vm74, 1.0, %v60
    %v76 = vlog2.pop %v75
    %v77 = vmul.f32 %v76, 0.6931472
    %v78 = vsub.f32 %v77, %v73
    %v79 = vmul.f32 %v60, %v78
    %v80 = vld [vmem:[#allocation2] sm:$0xff]
    %v81 = vadd.f32 %v80, %v79
    %82 = vst.msk [vmem:[#allocation2] sm:$0xff] %vm52, %v81
    // Predicated region
    $region22: #{tpu_custom_call.1} parent=1 // pred_check
      %p83 = pneg %p44
    $region23: #{tpu_custom_call.1} parent=1 // pred_check_branch
      %85 = sbr.rel (%p83) target = $region25
    $region24: #{tpu_custom_call.1} parent=1 // pred_region
      %v86 = vld [vmem:[#allocation2] sm:$0xff]
      %87 = vst.msk [vmem:[#allocation8] sm:$0xff] %vm52, %v86
    $region25: #{tpu_custom_call.1} parent=1 // pred_fallthru
      _
    // Predicated region
    $region26: #{tpu_custom_call.1} parent=1 // pred_check
      _
    $region27: #{tpu_custom_call.1} parent=1 // pred_check_branch
      %89 = sbr.rel (0) target = $region29
    $region28: #{tpu_custom_call.1} parent=1 // pred_region
      %s91 = ssub.s32 128, 128
      %92 = vsyncadd [#allocation5], %s91
      %s94 = sshll.u32 [#allocation8], 4
      %s95 = int_to_ptr.vmem [resolvable:$true] %s94
      %97 = dma.vmem_to_hbm [thread:$0]  %s95, 128, %s2, [#allocation5]
    $region29: #{tpu_custom_call.1} parent=1 // pred_fallthru
      _
    // Predicated region
    $region30: #{tpu_custom_call.1} parent=1 // pred_check
      _
    $region31: #{tpu_custom_call.1} parent=1 // pred_check_branch
      %99 = sbr.rel (0) target = $region33
    $region32: #{tpu_custom_call.1} parent=1 // pred_region
      %100 = dma.done [#allocation5], 128
    $region33: #{tpu_custom_call.1} parent=1 // pred_fallthru
      _
    %101 = vsyncpa [#allocation4], 1
    %102 = vsyncpa [#allocation7], 1
    %103 = vsyncpa [#allocation5], 1

</llo_original>
